<compile_context>
chip_gen: v7x
topology: tpu7x:2x2x1
jax: 0.10.0
libtpu: 0.0.40
codegen_flags: <defaults>
</compile_context>

<pallas_src>
import numpy as np
import jax
import jax.numpy as jnp
from jax.experimental import pallas as pl
from jax.experimental.pallas import tpu as pltpu

Z_SIZE = 4            # z_size
OUTPUT_SIZE = 3       # output_size (default)
Z_SCALE = 1.0         # z_scale (default)
LANE = 128            # lane width (pixels per row)
MAX_TILE_ROWS = 512   # rows per grid step -> 64K pixels, ~1.5 MiB live per step
N_W = 8               # padded length of the SMEM weight vector


def _round_up(n, m):
    return ((n + m - 1) // m) * m


def cppn_kernel(w_ref, x_ref, y_ref, z0_ref, out_ref):
    # w_ref  : SMEM (N_W,) f32  = [w_x, w_y, w_z0/z_scale, w_o0 .. w_o{C-1}, 0...]
    # x_ref, y_ref, z0_ref : VMEM (tile_rows, 128) f32, pixels lane-dense
    # out_ref: VMEM (OUTPUT_SIZE, tile_rows, 128) f32, channel-major
    pre = (w_ref[0] * x_ref[...]
           + w_ref[1] * y_ref[...]
           + w_ref[2] * z0_ref[...])
    h = jnp.tanh(pre)                                   # hidden node (EUP)
    for c in range(OUTPUT_SIZE):                        # static unroll, 3 channels
        out_ref[c] = jax.nn.sigmoid(w_ref[3 + c] * h)   # output nodes (EUP)


def pack_weights(w_x, w_y, w_z0, w_out, z_scale=Z_SCALE):
    """Build the SMEM scalar-weight vector; z_scale is folded into the z0 weight."""
    vec = jnp.zeros((N_W,), jnp.float32)
    vec = vec.at[0].set(w_x)
    vec = vec.at[1].set(w_y)
    vec = vec.at[2].set(w_z0 / z_scale)
    vec = vec.at[3:3 + OUTPUT_SIZE].set(w_out)
    return vec


def node_cppn_forward(X, Y, R, Z, w_vec):
    """Pallas implementation of Node_CPPN.forward(X, Y, R, Z).

    X, Y, R: (N, 1) float32;  Z: (N, Z_SIZE) float32.
    Returns (N, OUTPUT_SIZE, 1) float32, matching torch.stack([(N,1)...], dim=1).
    R is unused, exactly as in the PyTorch forward.
    """
    del R
    N = X.shape[0]
    n_rows = pl.cdiv(N, LANE)
    tile_rows = min(MAX_TILE_ROWS, _round_up(n_rows, 8))
    n_rows_pad = _round_up(n_rows, tile_rows)
    n_pad = n_rows_pad * LANE

    def lanes(v):
        v = v.reshape(-1).astype(jnp.float32)
        v = jnp.pad(v, (0, n_pad - v.shape[0]))
        return v.reshape(n_rows_pad, LANE)

    x2 = lanes(X)
    y2 = lanes(Y)
    z2 = lanes(Z[:, 0])          # only z0 feeds the hidden node

    grid = (n_rows_pad // tile_rows,)
    pix_spec = pl.BlockSpec((tile_rows, LANE), lambda i: (i, 0))

    out = pl.pallas_call(
        cppn_kernel,
        out_shape=jax.ShapeDtypeStruct((OUTPUT_SIZE, n_rows_pad, LANE),
                                       jnp.float32),
        grid_spec=pltpu.PrefetchScalarGridSpec(
            num_scalar_prefetch=0,
            grid=grid,
            in_specs=[
                pl.BlockSpec(memory_space=pltpu.MemorySpace.SMEM),  # scalar weights
                pix_spec,                                           # X
                pix_spec,                                           # Y
                pix_spec,                                           # Z[:, 0]
            ],
            out_specs=pl.BlockSpec((OUTPUT_SIZE, tile_rows, LANE),
                                   lambda i: (0, i, 0)),
        ),
        compiler_params=pltpu.CompilerParams(
            dimension_semantics=("parallel",)),   # shards row-tiles across TCs on v7x
    )(w_vec, x2, y2, z2)

    # (C, rows, 128) -> (C, n_pad) -> drop padding -> (N, C, 1) as in torch.stack(dim=1)
    out = out.reshape(OUTPUT_SIZE, n_pad)[:, :N]
    return jnp.transpose(out, (1, 0)).reshape(N, OUTPUT_SIZE, 1)


def build_weights(key):
    """Deterministic stand-in for Node_CPPN._get_new_weight (normal(0, 1.7) scalars)."""
    ws = jax.random.normal(key, (2 + 1 + OUTPUT_SIZE,), jnp.float32) * 1.7
    w_x, w_y, w_z0 = ws[0], ws[1], ws[2]
    w_out = ws[3:3 + OUTPUT_SIZE]
    return w_x, w_y, w_z0, w_out


def reference_forward(X, Y, Z, w_x, w_y, w_z0, w_out):
    h = jnp.tanh(w_x * X + w_y * Y + w_z0 * (Z[:, 0:1] / Z_SCALE))   # (N, 1)
    o = jax.nn.sigmoid(h * w_out[None, :])                           # (N, OUTPUT_SIZE)
    return o.reshape(-1, OUTPUT_SIZE, 1)


if __name__ == "__main__":
    key = jax.random.PRNGKey(0)
    k_w, k_z = jax.random.split(key)

    # Coordinate grid exactly like CPPN.render_image (width=height=16 -> 256 pixels).
    width = height = 16
    xs = np.linspace(-1.0, 1.0, width)
    ys = np.linspace(-1.0, 1.0, height)
    xv, yv = np.meshgrid(xs, ys)
    rv = np.sqrt(xv ** 2 + yv ** 2)
    X = jnp.asarray(xv.reshape(-1, 1), jnp.float32)
    Y = jnp.asarray(yv.reshape(-1, 1), jnp.float32)
    R = jnp.asarray(rv.reshape(-1, 1), jnp.float32)          # unused, API parity
    z = jax.random.normal(k_z, (Z_SIZE,), jnp.float32)
    Z = jnp.broadcast_to(z, (X.shape[0], Z_SIZE))             # z.repeat(...).view(...)

    w_x, w_y, w_z0, w_out = build_weights(k_w)
    w_vec = pack_weights(w_x, w_y, w_z0, w_out, Z_SCALE)

    out = node_cppn_forward(X, Y, R, Z, w_vec)
    out = jax.block_until_ready(out)

    ref = reference_forward(X, Y, Z, w_x, w_y, w_z0, w_out)
    assert out.shape == (X.shape[0], OUTPUT_SIZE, 1)
    np.testing.assert_allclose(np.asarray(out), np.asarray(ref), rtol=1e-3, atol=1e-4)

    print("KERNEL_OK")
</pallas_src>

<mosaic_0001>
module attributes {stable_mosaic.version = 11 : i64} {
  func.func @cppn_kernel(%arg0: i32, %arg1: memref<8xf32, #tpu.memory_space<smem>>, %arg2: memref<8x128xf32, #tpu.memory_space<vmem>>, %arg3: memref<8x128xf32, #tpu.memory_space<vmem>>, %arg4: memref<8x128xf32, #tpu.memory_space<vmem>>, %arg5: memref<3x8x128xf32, #tpu.memory_space<vmem>>) attributes {dimension_semantics = [#tpu.dimension_semantics<parallel>], iteration_bounds = array<i64: 1>, scalar_prefetch = 0 : i64, scratch_operands = 0 : i64, tpu.core_type = #tpu.core_type<tc>, window_params = [{transform_indices = @transform_0, window_bounds = array<i64: 8>}, {transform_indices = @transform_1, window_bounds = array<i64: 8, 128>}, {transform_indices = @transform_2, window_bounds = array<i64: 8, 128>}, {transform_indices = @transform_3, window_bounds = array<i64: 8, 128>}, {transform_indices = @transform_4, window_bounds = array<i64: 3, 8, 128>}]} {
    %c0 = arith.constant 0 : index
    %0 = memref.load %arg1[%c0] : memref<8xf32, #tpu.memory_space<smem>>
    %c0_0 = arith.constant 0 : index
    %c0_1 = arith.constant 0 : index
    %1 = vector.load %arg2[%c0_0, %c0_1] : memref<8x128xf32, #tpu.memory_space<vmem>>, vector<8x128xf32>
    %2 = vector.broadcast %0 : f32 to vector<8x128xf32>
    %3 = arith.mulf %2, %1 : vector<8x128xf32>
    %c1 = arith.constant 1 : index
    %4 = memref.load %arg1[%c1] : memref<8xf32, #tpu.memory_space<smem>>
    %c0_2 = arith.constant 0 : index
    %c0_3 = arith.constant 0 : index
    %5 = vector.load %arg3[%c0_2, %c0_3] : memref<8x128xf32, #tpu.memory_space<vmem>>, vector<8x128xf32>
    %6 = vector.broadcast %4 : f32 to vector<8x128xf32>
    %7 = arith.mulf %6, %5 : vector<8x128xf32>
    %8 = arith.addf %3, %7 : vector<8x128xf32>
    %c2 = arith.constant 2 : index
    %9 = memref.load %arg1[%c2] : memref<8xf32, #tpu.memory_space<smem>>
    %c0_4 = arith.constant 0 : index
    %c0_5 = arith.constant 0 : index
    %10 = vector.load %arg4[%c0_4, %c0_5] : memref<8x128xf32, #tpu.memory_space<vmem>>, vector<8x128xf32>
    %11 = vector.broadcast %9 : f32 to vector<8x128xf32>
    %12 = arith.mulf %11, %10 : vector<8x128xf32>
    %13 = arith.addf %8, %12 : vector<8x128xf32>
    %14 = math.tanh %13 : vector<8x128xf32>
    %c3 = arith.constant 3 : index
    %15 = memref.load %arg1[%c3] : memref<8xf32, #tpu.memory_space<smem>>
    %16 = vector.broadcast %15 : f32 to vector<8x128xf32>
    %17 = arith.mulf %16, %14 : vector<8x128xf32>
    %18 = arith.negf %17 : vector<8x128xf32>
    %19 = math.exp %18 : vector<8x128xf32>
    %cst = arith.constant 1.000000e+00 : f32
    %20 = vector.broadcast %cst : f32 to vector<8x128xf32>
    %21 = arith.addf %20, %19 : vector<8x128xf32>
    %22 = arith.divf %20, %21 : vector<8x128xf32>
    %c0_6 = arith.constant 0 : index
    %c0_7 = arith.constant 0 : index
    %c0_8 = arith.constant 0 : index
    %23 = vector.load %arg5[%c0_6, %c0_7, %c0_8] : memref<3x8x128xf32, #tpu.memory_space<vmem>>, vector<1x8x128xf32>
    %24 = vector.shape_cast %23 : vector<1x8x128xf32> to vector<8x128xf32>
    %25 = vector.shape_cast %22 : vector<8x128xf32> to vector<1x8x128xf32>
    tpu.vector_store %arg5[%c0_6, %c0_7, %c0_8], %25 {strides = array<i32>} : memref<3x8x128xf32, #tpu.memory_space<vmem>>, vector<1x8x128xf32>,
    %c4 = arith.constant 4 : index
    %26 = memref.load %arg1[%c4] : memref<8xf32, #tpu.memory_space<smem>>
    %27 = vector.broadcast %26 : f32 to vector<8x128xf32>
    %28 = arith.mulf %27, %14 : vector<8x128xf32>
    %29 = arith.negf %28 : vector<8x128xf32>
    %30 = math.exp %29 : vector<8x128xf32>
    %cst_9 = arith.constant 1.000000e+00 : f32
    %31 = vector.broadcast %cst_9 : f32 to vector<8x128xf32>
    %32 = arith.addf %31, %30 : vector<8x128xf32>
    %33 = arith.divf %31, %32 : vector<8x128xf32>
    %c1_10 = arith.constant 1 : index
    %c0_11 = arith.constant 0 : index
    %c0_12 = arith.constant 0 : index
    %34 = vector.load %arg5[%c1_10, %c0_11, %c0_12] : memref<3x8x128xf32, #tpu.memory_space<vmem>>, vector<1x8x128xf32>
    %35 = vector.shape_cast %34 : vector<1x8x128xf32> to vector<8x128xf32>
    %36 = vector.shape_cast %33 : vector<8x128xf32> to vector<1x8x128xf32>
    tpu.vector_store %arg5[%c1_10, %c0_11, %c0_12], %36 {strides = array<i32>} : memref<3x8x128xf32, #tpu.memory_space<vmem>>, vector<1x8x128xf32>,
    %c5 = arith.constant 5 : index
    %37 = memref.load %arg1[%c5] : memref<8xf32, #tpu.memory_space<smem>>
    %38 = vector.broadcast %37 : f32 to vector<8x128xf32>
    %39 = arith.mulf %38, %14 : vector<8x128xf32>
    %40 = arith.negf %39 : vector<8x128xf32>
    %41 = math.exp %40 : vector<8x128xf32>
    %cst_13 = arith.constant 1.000000e+00 : f32
    %42 = vector.broadcast %cst_13 : f32 to vector<8x128xf32>
    %43 = arith.addf %42, %41 : vector<8x128xf32>
    %44 = arith.divf %42, %43 : vector<8x128xf32>
    %c2_14 = arith.constant 2 : index
    %c0_15 = arith.constant 0 : index
    %c0_16 = arith.constant 0 : index
    %45 = vector.load %arg5[%c2_14, %c0_15, %c0_16] : memref<3x8x128xf32, #tpu.memory_space<vmem>>, vector<1x8x128xf32>
    %46 = vector.shape_cast %45 : vector<1x8x128xf32> to vector<8x128xf32>
    %47 = vector.shape_cast %44 : vector<8x128xf32> to vector<1x8x128xf32>
    tpu.vector_store %arg5[%c2_14, %c0_15, %c0_16], %47 {strides = array<i32>} : memref<3x8x128xf32, #tpu.memory_space<vmem>>, vector<1x8x128xf32>,
    return
  }
  func.func @transform_0(%arg0: i32) -> i32 {
    %c0_i32 = arith.constant 0 : i32
    %c0_i32_0 = arith.constant 0 : i32
    return %c0_i32 : i32
  }
  func.func @transform_1(%arg0: i32) -> (i32, i32) {
    %c0_i32 = arith.constant 0 : i32
    %c0_i32_0 = arith.constant 0 : i32
    return %arg0, %c0_i32 : i32, i32
  }
  func.func @transform_2(%arg0: i32) -> (i32, i32) {
    %c0_i32 = arith.constant 0 : i32
    %c0_i32_0 = arith.constant 0 : i32
    return %arg0, %c0_i32 : i32, i32
  }
  func.func @transform_3(%arg0: i32) -> (i32, i32) {
    %c0_i32 = arith.constant 0 : i32
    %c0_i32_0 = arith.constant 0 : i32
    return %arg0, %c0_i32 : i32, i32
  }
  func.func @transform_4(%arg0: i32) -> (i32, i32, i32) {
    %c0_i32 = arith.constant 0 : i32
    %c0_i32_0 = arith.constant 0 : i32
    %c0_i32_1 = arith.constant 0 : i32
    return %c0_i32, %arg0, %c0_i32_0 : i32, i32, i32
  }
}

</mosaic_0001>

<llo_original>
// kernel: tpu_custom_call.1
$region0: #{tpu_custom_call.1}
  #allocation0 [shape = 'u32[]', space=smem, size = 0x4, offset = 0x4, fixed_abs, tag = 'smem constant byte address 0x4 - core index']
  #allocation1 [shape = 'u32[144,128]{1,0:T(1,128)}', space=vmem, size = 0x12000, scoped, tag = 'internal scratch']
  %s0 = inlined_call_operand.hbm [shape: f32[8], index: 0, kind: input, shape index: {}]
  %s1 = inlined_call_operand.hbm [shape: f32[8,128], index: 1, kind: input, shape index: {}]
  %s2 = inlined_call_operand.hbm [shape: f32[8,128], index: 2, kind: input, shape index: {}]
  %s3 = inlined_call_operand.vmem [shape: f32[8,128], index: 3, kind: input, shape index: {}]
  %s4 = inlined_call_operand.hbm [shape: f32[3,8,128], index: 4, kind: output, shape index: {}]
  %s5 = sld [smem:[#allocation0]]
  $region38: #{tpu_custom_call.1} parent=0
    _
  %s7 = ssub.s32 1, %s5
  %s8 = scalar_select 0, %s7, %s5
  $region1: #{tpu_custom_call.1} parent=0
    #allocation2 [shape = 'u8[512]{0}', space=smem, size = 0x200, scoped, tag = 'input window, operand 0, single buffered']
    #allocation3 [shape = 's32[1]{0}', space=sflag, size = 0x4, scoped, tag = 'scoped memory for tpu_custom_call.1']
    #allocation4 [shape = 's32[1]{0}', space=sflag, size = 0x4, scoped, tag = 'scoped memory for tpu_custom_call.1']
    #allocation5 [shape = 's32[1]{0}', space=sflag, size = 0x4, scoped, tag = 'scoped memory for tpu_custom_call.1']
    #allocation6 [shape = 'u8[4096]{0}', space=vmem, size = 0x1000, scoped, tag = 'input window, operand 1, single buffered']
    #allocation7 [shape = 'u8[4096]{0}', space=vmem, size = 0x1000, scoped, tag = 'input window, operand 2, single buffered']
    #allocation8 [shape = 's32[1]{0}', space=sflag, size = 0x4, scoped, tag = 'scoped memory for tpu_custom_call.1']
    #allocation9 [shape = 'u8[12288]{0}', space=vmem, size = 0x3000, scoped, tag = 'output window, operand 0, single buffered']
    %9 = vsyncpa [#allocation5], 0
    %10 = vsyncpa [#allocation3], 0
    %11 = vsyncpa [#allocation8], 0
    %12 = vsyncpa [#allocation4], 0
    // Predicated region
    $region2: #{tpu_custom_call.1} parent=1 // pred_check
      _
    $region3: #{tpu_custom_call.1} parent=1 // pred_check_branch
      %14 = sbr.rel (0) target = $region5
    $region4: #{tpu_custom_call.1} parent=1 // pred_region
      %s16 = ssub.s32 16, 16
      %17 = vsyncadd [#allocation5], %s16
      %20 = dma.hbm_to_smem %s0, 16, [#allocation2], [#allocation5]
    $region5: #{tpu_custom_call.1} parent=1 // pred_fallthru
      _
    // Predicated region
    $region6: #{tpu_custom_call.1} parent=1 // pred_check
      _
    $region7: #{tpu_custom_call.1} parent=1 // pred_check_branch
      %22 = sbr.rel (0) target = $region9
    $region8: #{tpu_custom_call.1} parent=1 // pred_region
      %s24 = ssub.s32 128, 128
      %25 = vsyncadd [#allocation3], %s24
      %s27 = sshll.u32 [#allocation6], 4
      %s28 = int_to_ptr.vmem [resolvable:$true] %s27
      %30 = dma.hbm_to_vmem [thread:$0]  %s1, 128, %s28, [#allocation3]
    $region9: #{tpu_custom_call.1} parent=1 // pred_fallthru
      _
    // Predicated region
    $region10: #{tpu_custom_call.1} parent=1 // pred_check
      _
    $region11: #{tpu_custom_call.1} parent=1 // pred_check_branch
      %32 = sbr.rel (0) target = $region13
    $region12: #{tpu_custom_call.1} parent=1 // pred_region
      %s34 = ssub.s32 128, 128
      %35 = vsyncadd [#allocation8], %s34
      %s37 = sshll.u32 [#allocation7], 4
      %s38 = int_to_ptr.vmem [resolvable:$true] %s37
      %40 = dma.hbm_to_vmem [thread:$0]  %s2, 128, %s38, [#allocation8]
    $region13: #{tpu_custom_call.1} parent=1 // pred_fallthru
      _
    // Predicated region
    $region14: #{tpu_custom_call.1} parent=1 // pred_check
      _
    $region15: #{tpu_custom_call.1} parent=1 // pred_check_branch
      %42 = sbr.rel (0) target = $region17
    $region16: #{tpu_custom_call.1} parent=1 // pred_region
      _
    $region17: #{tpu_custom_call.1} parent=1 // pred_fallthru
      _
    // Predicated region
    $region18: #{tpu_custom_call.1} parent=1 // pred_check
      _
    $region19: #{tpu_custom_call.1} parent=1 // pred_check_branch
      %44 = sbr.rel (0) target = $region21
    $region20: #{tpu_custom_call.1} parent=1 // pred_region
      %45 = dma.done [#allocation5], 16
    $region21: #{tpu_custom_call.1} parent=1 // pred_fallthru
      _
    // Predicated region
    $region22: #{tpu_custom_call.1} parent=1 // pred_check
      _
    $region23: #{tpu_custom_call.1} parent=1 // pred_check_branch
      %47 = sbr.rel (0) target = $region25
    $region24: #{tpu_custom_call.1} parent=1 // pred_region
      %48 = dma.done [#allocation3], 128
    $region25: #{tpu_custom_call.1} parent=1 // pred_fallthru
      _
    // Predicated region
    $region26: #{tpu_custom_call.1} parent=1 // pred_check
      _
    $region27: #{tpu_custom_call.1} parent=1 // pred_check_branch
      %50 = sbr.rel (0) target = $region29
    $region28: #{tpu_custom_call.1} parent=1 // pred_region
      %51 = dma.done [#allocation8], 128
    $region29: #{tpu_custom_call.1} parent=1 // pred_fallthru
      _
    %52 = sfence
    %s53 = sld [smem:[#allocation2]]
    %v54 = vld [vmem:[#allocation6] sm:$0xff]
    %v55 = vstv %s53
    %v56 = vmul.f32 %v55, %v54
    %s57 = sld [smem:[#allocation2 + $0x1]]
    %v58 = vld [vmem:[#allocation7] sm:$0xff]
    %v59 = vstv %s57
    %v60 = vmul.f32 %v59, %v58
    %v61 = vadd.f32 %v56, %v60
    %s62 = sld [smem:[#allocation2 + $0x2]]
    %v63 = vld [vmem:[%s3] sm:$0xff]
    %v64 = vstv %s62
    %v65 = vmul.f32 %v64, %v63
    %v66 = vadd.f32 %v61, %v65
    %v67 = vtanh.pop %v66
    %s68 = sld [smem:[#allocation2 + $0x3]]
    %v69 = vstv %s68
    %v70 = vmul.f32 %v69, %v67
    %v71 = vxor.u32 %v70, 2147483648
    %v72 = vmul.f32 %v71, 1.442695
    %v73 = vpow.pop %v72
    %v74 = vadd.f32 %v73, 1.0
    %v75 = vrcp.pop %v74
    %v76 = vmul.f32 1.0, %v75
    %77 = vst [vmem:[#allocation9] sm:$0xff] %v76
    %s78 = sld [smem:[#allocation2 + $0x4]]
    %v79 = vstv %s78
    %v80 = vmul.f32 %v79, %v67
    %v81 = vxor.u32 %v80, 2147483648
    %v82 = vmul.f32 %v81, 1.442695
    %v83 = vpow.pop %v82
    %v84 = vadd.f32 %v83, 1.0
    %v85 = vrcp.pop %v84
    %v86 = vmul.f32 1.0, %v85
    %s87 = scalar_lea.vmem [#allocation9], 8
    %88 = vst [vmem:[%s87] sm:$0xff] %v86
    %s89 = sld [smem:[#allocation2 + $0x5]]
    %v90 = vstv %s89
    %v91 = vmul.f32 %v90, %v67
    %v92 = vxor.u32 %v91, 2147483648
    %v93 = vmul.f32 %v92, 1.442695
    %v94 = vpow.pop %v93
    %v95 = vadd.f32 %v94, 1.0
    %v96 = vrcp.pop %v95
    %v97 = vmul.f32 1.0, %v96
    %s98 = scalar_lea.vmem [#allocation9], 16
    %99 = vst [vmem:[%s98] sm:$0xff] %v97
    // Predicated region
    $region30: #{tpu_custom_call.1} parent=1 // pred_check
      _
    $region31: #{tpu_custom_call.1} parent=1 // pred_check_branch
      %101 = sbr.rel (0) target = $region33
    $region32: #{tpu_custom_call.1} parent=1 // pred_region
      %s103 = ssub.s32 384, 384
      %104 = vsyncadd [#allocation4], %s103
      %s105 = sshll.u32 [#allocation9], 4
      %s106 = int_to_ptr.vmem [resolvable:$true] %s105
      %111 = dma.vmem_to_hbm [thread:$0]  %s106, 384, %s4, [#allocation4], 128, 128, 8
    $region33: #{tpu_custom_call.1} parent=1 // pred_fallthru
      _
    // Predicated region
    $region34: #{tpu_custom_call.1} parent=1 // pred_check
      _
    $region35: #{tpu_custom_call.1} parent=1 // pred_check_branch
      %113 = sbr.rel (0) target = $region37
    $region36: #{tpu_custom_call.1} parent=1 // pred_region
      %114 = dma.done [#allocation4], 384
    $region37: #{tpu_custom_call.1} parent=1 // pred_fallthru
      _
    %115 = vsyncpa [#allocation3], 1
    %116 = vsyncpa [#allocation8], 1
    %117 = vsyncpa [#allocation4], 1
    %118 = vsyncpa [#allocation5], 1

</llo_original>
